<compile_context>
chip_gen: v7x
topology: tpu7x:2x2x1
jax: 0.10.0
libtpu: 0.0.40
codegen_flags: <defaults>
</compile_context>

<pallas_src>
import functools
import math

import jax
import jax.numpy as jnp
from jax.experimental import pallas as pl
from jax.experimental.pallas import tpu as pltpu


_BIG = 1e30  # finite sentinel for padded (non-existent) mixture components


def _gmm_prior_kernel(pose_ref, rcat_t_ref, sseg_t_ref, rmu_t_ref, consts_t_ref,
                      o_ref, *, use_max):
    """One batch tile of per-sample negative GMM log-likelihood (lane axis = batch)."""
    x = pose_ref[...].astype(jnp.float32)                       # [tb, D]

    # z_t[p, b] = sum_d RcatT[p, d] * x[b, d]
    # Single wide MXU matmul (q @ k^T pattern: rhs contracted on its minor dim);
    # result already has batch in the lane axis.
    z_t = jnp.einsum("pd,bd->pb", rcat_t_ref[...], x,
                     preferred_element_type=jnp.float32)        # [Np, tb]

    # ||L_m^T x - L_m^T mu_m||^2, per stacked row, squared residuals.
    w_t = jnp.square(z_t - rmu_t_ref[...])                      # [Np, tb]

    # Segmented sum over each component's D rows via one selector matmul.
    quad_t = jnp.dot(sseg_t_ref[...], w_t,
                     preferred_element_type=jnp.float32)        # [Mp, tb]

    # Folded per-component constants (bias column): consts - 0.5*quad.
    e = consts_t_ref[...] - 0.5 * quad_t                        # [Mp, tb]

    if use_max:
        # min over components of the per-component NLL term (padded rows = +BIG).
        res = jnp.min(e, axis=0, keepdims=True)                 # [1, tb]
    else:
        # -logsumexp over components (padded rows = -BIG -> exp == 0).
        m = jnp.max(e, axis=0, keepdims=True)                   # [1, tb]
        s = jnp.sum(jnp.exp(e - m), axis=0, keepdims=True)      # [1, tb]
        res = -(m + jnp.log(s))

    o_ref[...] = res                                            # lane-dense (1, tb)


def _pack_gmm_params(means, precisions, log_weights, cov_dets, use_max):
    """Init-time packing (mirrors the work the torch module does in __init__)."""
    means = means.astype(jnp.float32)
    prec = precisions.astype(jnp.float32)
    prec = 0.5 * (prec + jnp.swapaxes(prec, -1, -2))            # symmetrize before Cholesky
    M, D = means.shape

    d_pi = D * math.log(2.0 * math.pi)
    log_w = log_weights.astype(jnp.float32)
    cd = cov_dets.astype(jnp.float32)
    if use_max:
        consts = -0.5 * (cd + d_pi) - log_w                     # min path bias
        pad_val = _BIG                                          # never selected by min
    else:
        consts = log_w - 0.5 * d_pi - 0.5 * cd                  # logsumexp path bias
        pad_val = -_BIG                                         # exp(-BIG) == 0

    # P_m = L_m L_m^T  =>  quad_m(x) = ||L_m^T (x - mu_m)||^2 = ||R_m x - R_m mu_m||^2.
    L = jnp.linalg.cholesky(prec)                               # [M, D, D]
    r = jnp.swapaxes(L, -1, -2)                                 # R_m = L_m^T
    rcat_t = r.reshape(M * D, D)                                # row m*D+i = R_m[i, :]
    rmu_t = jnp.einsum("mij,mj->mi", r, means).reshape(M * D, 1)

    n_p = ((M * D + 7) // 8) * 8                                # pad stacked rows to sublane mult
    m_p = ((M + 7) // 8) * 8                                    # pad components to sublane mult
    if n_p != M * D:
        rcat_t = jnp.concatenate(
            [rcat_t, jnp.zeros((n_p - M * D, D), jnp.float32)], axis=0)
        rmu_t = jnp.concatenate(
            [rmu_t, jnp.zeros((n_p - M * D, 1), jnp.float32)], axis=0)

    # Selector for the segmented sum: sseg_t[m, m*D + d] = 1.
    comp_of_row = jnp.arange(n_p) // D
    sseg_t = ((jnp.arange(m_p)[:, None] == comp_of_row[None, :])
              & (jnp.arange(n_p)[None, :] < M * D)).astype(jnp.float32)   # [Mp, Np]

    consts_t = jnp.full((m_p, 1), pad_val, jnp.float32).at[:M, 0].set(consts)
    return rcat_t, sseg_t, rmu_t, consts_t


def gmm_prior(pose, means, precisions, log_weights, cov_dets, *,
              epsilon=1e-16, use_max=False, reduction="mean", block_b=2048):
    """Pallas implementation of GMMPrior.forward.

    pose:        [B, D]   (4-D inputs raise NotImplementedError, as in the spec)
    means:       [M, D]
    precisions:  [M, D, D]   (inverse covariances, computed at init)
    log_weights: [M]         (log of mixture weights, == nll_weights)
    cov_dets:    [M]         (log-determinant of each covariance)
    epsilon is stored by the torch module but unused in forward; kept for API parity.
    """
    if pose.ndim == 4:
        raise NotImplementedError
    B, D = pose.shape
    orig_dtype = pose.dtype

    rcat_t, sseg_t, rmu_t, consts_t = _pack_gmm_params(
        means, precisions, log_weights, cov_dets, use_max)
    n_p = rcat_t.shape[0]
    m_p = sseg_t.shape[0]

    # Large batch tile (grid-step overhead dominates otherwise), but capped so at
    # least 2 tiles exist when the batch allows (keeps both v7x TensorCores busy).
    half = max(8, ((pl.cdiv(B, 2) + 7) // 8) * 8)
    tb = max(8, min(int(block_b), half))
    tb = ((tb + 7) // 8) * 8
    num_tiles = pl.cdiv(B, tb)   # ragged last tile reads past the end; rows sliced off

    kernel = functools.partial(_gmm_prior_kernel, use_max=use_max)
    out = pl.pallas_call(
        kernel,
        out_shape=jax.ShapeDtypeStruct((num_tiles, tb), jnp.float32),
        grid_spec=pltpu.PrefetchScalarGridSpec(
            num_scalar_prefetch=0,
            grid=(num_tiles,),
            in_specs=[
                pl.BlockSpec((tb, D), lambda i: (i, 0)),       # pose tile (streams)
                pl.BlockSpec((n_p, D), lambda i: (0, 0)),      # stacked Cholesky rows (resident)
                pl.BlockSpec((m_p, n_p), lambda i: (0, 0)),    # segment-sum selector (resident)
                pl.BlockSpec((n_p, 1), lambda i: (0, 0)),      # R_m mu_m column (resident)
                pl.BlockSpec((m_p, 1), lambda i: (0, 0)),      # folded per-component consts
            ],
            out_specs=pl.BlockSpec((1, tb), lambda i: (i, 0)),  # lane-dense output row
        ),
        compiler_params=pltpu.CompilerParams(
            dimension_semantics=("parallel",),   # no carried state -> both TCs can run
        ),
    )(pose, rcat_t, sseg_t, rmu_t, consts_t)

    per_sample = out.reshape(-1)[:B]
    if reduction == "mean":
        loss = jnp.mean(per_sample)
    elif reduction == "sum":
        loss = jnp.sum(per_sample)
    else:  # 'none'
        return per_sample.astype(orig_dtype)
    return loss.astype(orig_dtype)


def gmm_prior_ref(pose, means, precisions, log_weights, cov_dets, *,
                  use_max=False, reduction="mean"):
    """Pure-JAX reference mirroring the PyTorch forward."""
    pose = pose.astype(jnp.float32)
    D = means.shape[1]
    diff = pose[:, None, :] - means[None, :, :]                       # [B, M, D]
    pd = jnp.einsum("mij,bmj->bmi", precisions.astype(jnp.float32), diff,
                    precision=jax.lax.Precision.HIGHEST)
    quad = jnp.sum(pd * diff, axis=-1)                                # [B, M]
    pi_term = math.log(2.0 * math.pi)
    if use_max:
        ll = -0.5 * (quad + cov_dets[None, :] + D * pi_term) - log_weights[None, :]
        per = jnp.min(ll, axis=1)
    else:
        expo = (log_weights[None, :] - 0.5 * D * pi_term
                - 0.5 * cov_dets[None, :] - 0.5 * quad)
        per = -jax.nn.logsumexp(expo, axis=-1)
    if reduction == "mean":
        return jnp.mean(per)
    elif reduction == "sum":
        return jnp.sum(per)
    return per


if __name__ == "__main__":
    key = jax.random.PRNGKey(0)
    # Small shapes: batch=2, num_gaussians=6, pose dim=32.
    B, D, M = 2, 32, 6
    k_means, k_cov, k_w, k_pose, k_pose2 = jax.random.split(key, 5)

    # Synthesize GMM parameters (normally loaded from a pickle at init time).
    means = jax.random.normal(k_means, (M, D), dtype=jnp.float32) * 0.5
    A = jax.random.normal(k_cov, (M, D, D), dtype=jnp.float32) * 0.1
    covs = jnp.einsum("mij,mkj->mik", A, A) + 0.5 * jnp.eye(D, dtype=jnp.float32)[None]
    precisions = jnp.linalg.inv(covs)
    cov_dets = jnp.linalg.slogdet(covs)[1].astype(jnp.float32)   # log det (covs are PD)
    w = jax.random.uniform(k_w, (M,), dtype=jnp.float32) + 0.1
    weights = w / jnp.sum(w)
    log_weights = jnp.log(weights)                               # == nll_weights

    pose = jax.random.normal(k_pose, (B, D), dtype=jnp.float32)

    # Tolerances are slightly looser than before because the fused matmuls use
    # DEFAULT (non-HIGHEST) MXU precision, per the performance review.
    RTOL, ATOL = 2e-3, 2e-2

    # Default path: logsumexp likelihood (use_max=False), reduction='mean'.
    out = jax.block_until_ready(
        gmm_prior(pose, means, precisions, log_weights, cov_dets, use_max=False))
    ref = gmm_prior_ref(pose, means, precisions, log_weights, cov_dets, use_max=False)
    assert jnp.allclose(out, ref, rtol=RTOL, atol=ATOL), (out, ref)

    # Alternate path: max (min-NLL) likelihood.
    out_max = jax.block_until_ready(
        gmm_prior(pose, means, precisions, log_weights, cov_dets, use_max=True))
    ref_max = gmm_prior_ref(pose, means, precisions, log_weights, cov_dets, use_max=True)
    assert jnp.allclose(out_max, ref_max, rtol=RTOL, atol=ATOL), (out_max, ref_max)

    # Multi-tile grid + ragged last tile + 'none' reduction path.
    B2 = 50
    pose2 = jax.random.normal(k_pose2, (B2, D), dtype=jnp.float32)
    out_none = jax.block_until_ready(
        gmm_prior(pose2, means, precisions, log_weights, cov_dets, reduction="none"))
    ref_none = gmm_prior_ref(pose2, means, precisions, log_weights, cov_dets,
                             reduction="none")
    assert out_none.shape == (B2,)
    assert jnp.allclose(out_none, ref_none, rtol=RTOL, atol=ATOL)

    print("KERNEL_OK")
</pallas_src>

<mosaic_0001>
module attributes {stable_mosaic.version = 11 : i64} {
  func.func @_gmm_prior_kernel(%arg0: i32, %arg1: memref<8x32xf32, #tpu.memory_space<vmem>>, %arg2: memref<192x32xf32, #tpu.memory_space<vmem>>, %arg3: memref<8x192xf32, #tpu.memory_space<vmem>>, %arg4: memref<192x1xf32, #tpu.memory_space<vmem>>, %arg5: memref<8x1xf32, #tpu.memory_space<vmem>>, %arg6: memref<1x8xf32, #tpu.memory_space<vmem>>) attributes {dimension_semantics = [#tpu.dimension_semantics<parallel>], iteration_bounds = array<i64: 1>, scalar_prefetch = 0 : i64, scratch_operands = 0 : i64, tpu.core_type = #tpu.core_type<tc>, window_params = [{transform_indices = @transform_0, window_bounds = array<i64: 8, 32>}, {pipeline_mode = #tpu.pipeline_mode<synchronous>, transform_indices = @transform_1, window_bounds = array<i64: 192, 32>}, {pipeline_mode = #tpu.pipeline_mode<synchronous>, transform_indices = @transform_2, window_bounds = array<i64: 8, 192>}, {pipeline_mode = #tpu.pipeline_mode<synchronous>, transform_indices = @transform_3, window_bounds = array<i64: 192, 1>}, {pipeline_mode = #tpu.pipeline_mode<synchronous>, transform_indices = @transform_4, window_bounds = array<i64: 8, 1>}, {transform_indices = @transform_5, window_bounds = array<i64: 1, 8>}]} {
    %c0 = arith.constant 0 : index
    %c0_0 = arith.constant 0 : index
    %0 = vector.load %arg1[%c0, %c0_0] : memref<8x32xf32, #tpu.memory_space<vmem>>, vector<8x32xf32>
    %c0_1 = arith.constant 0 : index
    %c0_2 = arith.constant 0 : index
    %1 = vector.load %arg2[%c0_1, %c0_2] : memref<192x32xf32, #tpu.memory_space<vmem>>, vector<192x32xf32>
    "tpu.trace_start"() <{level = 10 : i32, message = "pd,bd->pb"}> : () -> ()
    %cst = arith.constant dense<0.000000e+00> : vector<192x8xf32>
    %2 = tpu.matmul %1, %0, %cst {dimension_numbers = #tpu.dot_dimension_numbers<[1], [1], [0], [0], [0, 0, 1, 0], [], []>} : vector<192x32xf32>, vector<8x32xf32>, vector<192x8xf32> -> vector<192x8xf32>
    "tpu.trace_stop"() : () -> ()
    %c0_3 = arith.constant 0 : index
    %c0_4 = arith.constant 0 : index
    %3 = vector.load %arg4[%c0_3, %c0_4] : memref<192x1xf32, #tpu.memory_space<vmem>>, vector<192x1xf32>
    %4 = vector.broadcast %3 : vector<192x1xf32> to vector<192x8xf32>
    %5 = arith.subf %2, %4 : vector<192x8xf32>
    %6 = arith.mulf %5, %5 : vector<192x8xf32>
    %c0_5 = arith.constant 0 : index
    %c0_6 = arith.constant 0 : index
    %7 = vector.load %arg3[%c0_5, %c0_6] : memref<8x192xf32, #tpu.memory_space<vmem>>, vector<8x192xf32>
    %cst_7 = arith.constant dense<0.000000e+00> : vector<8x8xf32>
    %8 = tpu.matmul %7, %6, %cst_7 {dimension_numbers = #tpu.dot_dimension_numbers<[1], [0], [0], [1], [0, 0, 1, 1], [], []>} : vector<8x192xf32>, vector<192x8xf32>, vector<8x8xf32> -> vector<8x8xf32>
    %c0_8 = arith.constant 0 : index
    %c0_9 = arith.constant 0 : index
    %9 = vector.load %arg5[%c0_8, %c0_9] : memref<8x1xf32, #tpu.memory_space<vmem>>, vector<8x1xf32>
    %cst_10 = arith.constant 5.000000e-01 : f32
    %10 = vector.broadcast %cst_10 : f32 to vector<8x8xf32>
    %11 = arith.mulf %10, %8 : vector<8x8xf32>
    %12 = vector.broadcast %9 : vector<8x1xf32> to vector<8x8xf32>
    %13 = arith.subf %12, %11 : vector<8x8xf32>
    %cst_11 = arith.constant dense<0xFF800000> : vector<8xf32>
    %14 = vector.multi_reduction <maximumf>, %13, %cst_11 [0] : vector<8x8xf32> to vector<8xf32>
    %15 = vector.shape_cast %14 : vector<8xf32> to vector<1x8xf32>
    %16 = vector.broadcast %15 : vector<1x8xf32> to vector<8x8xf32>
    %17 = arith.subf %13, %16 : vector<8x8xf32>
    %18 = math.exp %17 : vector<8x8xf32>
    %cst_12 = arith.constant dense<0.000000e+00> : vector<8xf32>
    %19 = vector.multi_reduction <add>, %18, %cst_12 [0] : vector<8x8xf32> to vector<8xf32>
    %20 = vector.shape_cast %19 : vector<8xf32> to vector<1x8xf32>
    %21 = math.log %20 : vector<1x8xf32>
    %22 = arith.addf %15, %21 : vector<1x8xf32>
    %cst_13 = arith.constant 0.000000e+00 : f32
    %23 = vector.broadcast %cst_13 : f32 to vector<1x8xf32>
    %24 = arith.subf %23, %22 : vector<1x8xf32>
    %c0_14 = arith.constant 0 : index
    %c0_15 = arith.constant 0 : index
    %25 = vector.load %arg6[%c0_14, %c0_15] : memref<1x8xf32, #tpu.memory_space<vmem>>, vector<1x8xf32>
    tpu.vector_store %arg6[%c0_14, %c0_15], %24 {strides = array<i32>} : memref<1x8xf32, #tpu.memory_space<vmem>>, vector<1x8xf32>,
    return
  }
  func.func @transform_0(%arg0: i32) -> (i32, i32) {
    %c0_i32 = arith.constant 0 : i32
    %c0_i32_0 = arith.constant 0 : i32
    return %arg0, %c0_i32 : i32, i32
  }
  func.func @transform_1(%arg0: i32) -> (i32, i32) {
    %c0_i32 = arith.constant 0 : i32
    %c0_i32_0 = arith.constant 0 : i32
    %c0_i32_1 = arith.constant 0 : i32
    return %c0_i32, %c0_i32_0 : i32, i32
  }
  func.func @transform_2(%arg0: i32) -> (i32, i32) {
    %c0_i32 = arith.constant 0 : i32
    %c0_i32_0 = arith.constant 0 : i32
    %c0_i32_1 = arith.constant 0 : i32
    return %c0_i32, %c0_i32_0 : i32, i32
  }
  func.func @transform_3(%arg0: i32) -> (i32, i32) {
    %c0_i32 = arith.constant 0 : i32
    %c0_i32_0 = arith.constant 0 : i32
    %c0_i32_1 = arith.constant 0 : i32
    return %c0_i32, %c0_i32_0 : i32, i32
  }
  func.func @transform_4(%arg0: i32) -> (i32, i32) {
    %c0_i32 = arith.constant 0 : i32
    %c0_i32_0 = arith.constant 0 : i32
    %c0_i32_1 = arith.constant 0 : i32
    return %c0_i32, %c0_i32_0 : i32, i32
  }
  func.func @transform_5(%arg0: i32) -> (i32, i32) {
    %c0_i32 = arith.constant 0 : i32
    %c0_i32_0 = arith.constant 0 : i32
    return %arg0, %c0_i32 : i32, i32
  }
}

</mosaic_0001>

<llo_original>
// kernel: tpu_custom_call.1
$region0: #{tpu_custom_call.1}
  #allocation0 [shape = 'u32[]', space=smem, size = 0x4, offset = 0x4, fixed_abs, tag = 'smem constant byte address 0x4 - core index']
  #allocation1 [shape = 'u32[144,128]{1,0:T(1,128)}', space=vmem, size = 0x12000, scoped, tag = 'internal scratch']
  %s0 = inlined_call_operand.vmem [shape: f32[2,32], index: 0, kind: input, shape index: {}]
  %s1 = inlined_call_operand.vmem [shape: f32[192,32], index: 1, kind: input, shape index: {}]
  %s2 = inlined_call_operand.vmem [shape: f32[8,192], index: 2, kind: input, shape index: {}]
  %s3 = inlined_call_operand.vmem [shape: f32[192,1], index: 3, kind: input, shape index: {}]
  %s4 = inlined_call_operand.vmem [shape: f32[8,1], index: 4, kind: input, shape index: {}]
  %s5 = inlined_call_operand.hbm [shape: f32[1,8], index: 5, kind: output, shape index: {}]
  %s6 = sld [smem:[#allocation0]]
  $region30: #{tpu_custom_call.1} parent=0
    _
  %s8 = ssub.s32 1, %s6
  %s9 = scalar_select 0, %s8, %s6
  $region1: #{tpu_custom_call.1} parent=0
    #allocation2 [shape = 'u8[512]{0}', space=vmem, size = 0x400, scoped, tag = 'output window, operand 0, single buffered']
    #allocation3 [shape = 's32[1]{0}', space=sflag, size = 0x4, scoped, tag = 'scoped memory for tpu_custom_call.1']
    %10 = vsyncpa [#allocation3], 0
    // Predicated region
    $region2: #{tpu_custom_call.1} parent=1 // pred_check
      _
    $region3: #{tpu_custom_call.1} parent=1 // pred_check_branch
      %12 = sbr.rel (0) target = $region5
    $region4: #{tpu_custom_call.1} parent=1 // pred_region
      _
    $region5: #{tpu_custom_call.1} parent=1 // pred_fallthru
      _
    // Predicated region
    $region6: #{tpu_custom_call.1} parent=1 // pred_check
      _
    $region7: #{tpu_custom_call.1} parent=1 // pred_check_branch
      %14 = sbr.rel (0) target = $region9
    $region8: #{tpu_custom_call.1} parent=1 // pred_region
      _
    $region9: #{tpu_custom_call.1} parent=1 // pred_fallthru
      _
    // Predicated region
    $region10: #{tpu_custom_call.1} parent=1 // pred_check
      _
    $region11: #{tpu_custom_call.1} parent=1 // pred_check_branch
      %16 = sbr.rel (0) target = $region13
    $region12: #{tpu_custom_call.1} parent=1 // pred_region
      _
    $region13: #{tpu_custom_call.1} parent=1 // pred_fallthru
      _
    // Predicated region
    $region14: #{tpu_custom_call.1} parent=1 // pred_check
      _
    $region15: #{tpu_custom_call.1} parent=1 // pred_check_branch
      %18 = sbr.rel (0) target = $region17
    $region16: #{tpu_custom_call.1} parent=1 // pred_region
      _
    $region17: #{tpu_custom_call.1} parent=1 // pred_fallthru
      _
    // Predicated region
    $region18: #{tpu_custom_call.1} parent=1 // pred_check
      _
    $region19: #{tpu_custom_call.1} parent=1 // pred_check_branch
      %20 = sbr.rel (0) target = $region21
    $region20: #{tpu_custom_call.1} parent=1 // pred_region
      _
    $region21: #{tpu_custom_call.1} parent=1 // pred_fallthru
      _
    %v21 = vld [vmem:[%s0] sm:$0xff]
    %v22 = vld [vmem:[%s1] sm:$0xff]
    %v23 = vld [vmem:[%s1 + $0x8] sm:$0xff]
    %v24 = vld [vmem:[%s1 + $0x10] sm:$0xff]
    %v25 = vld [vmem:[%s1 + $0x18] sm:$0xff]
    %v26 = vld [vmem:[%s1 + $0x20] sm:$0xff]
    %v27 = vld [vmem:[%s1 + $0x28] sm:$0xff]
    %v28 = vld [vmem:[%s1 + $0x30] sm:$0xff]
    %v29 = vld [vmem:[%s1 + $0x38] sm:$0xff]
    %v30 = vld [vmem:[%s1 + $0x40] sm:$0xff]
    %v31 = vld [vmem:[%s1 + $0x48] sm:$0xff]
    %v32 = vld [vmem:[%s1 + $0x50] sm:$0xff]
    %v33 = vld [vmem:[%s1 + $0x58] sm:$0xff]
    %v34 = vld [vmem:[%s1 + $0x60] sm:$0xff]
    %v35 = vld [vmem:[%s1 + $0x68] sm:$0xff]
    %v36 = vld [vmem:[%s1 + $0x70] sm:$0xff]
    %v37 = vld [vmem:[%s1 + $0x78] sm:$0xff]
    %v38 = vld [vmem:[%s1 + $0x80] sm:$0xff]
    %v39 = vld [vmem:[%s1 + $0x88] sm:$0xff]
    %v40 = vld [vmem:[%s1 + $0x90] sm:$0xff]
    %v41 = vld [vmem:[%s1 + $0x98] sm:$0xff]
    %v42 = vld [vmem:[%s1 + $0xa0] sm:$0xff]
    %v43 = vld [vmem:[%s1 + $0xa8] sm:$0xff]
    %v44 = vld [vmem:[%s1 + $0xb0] sm:$0xff]
    %v45 = vld [vmem:[%s1 + $0xb8] sm:$0xff]
    %vm46 = vcmask 261120
    %v48 = vsel %vm46, %v22, 0
    %v51 = vsel %vm46, %v23, 0
    %v54 = vsel %vm46, %v24, 0
    %v57 = vsel %vm46, %v25, 0
    %v60 = vsel %vm46, %v26, 0
    %v63 = vsel %vm46, %v27, 0
    %v66 = vsel %vm46, %v28, 0
    %v69 = vsel %vm46, %v29, 0
    %v72 = vsel %vm46, %v30, 0
    %v75 = vsel %vm46, %v31, 0
    %v78 = vsel %vm46, %v32, 0
    %v81 = vsel %vm46, %v33, 0
    %v84 = vsel %vm46, %v34, 0
    %v87 = vsel %vm46, %v35, 0
    %v90 = vsel %vm46, %v36, 0
    %v93 = vsel %vm46, %v37, 0
    %v96 = vsel %vm46, %v38, 0
    %v99 = vsel %vm46, %v39, 0
    %v102 = vsel %vm46, %v40, 0
    %v105 = vsel %vm46, %v41, 0
    %v108 = vsel %vm46, %v42, 0
    %v111 = vsel %vm46, %v43, 0
    %v114 = vsel %vm46, %v44, 0
    %v117 = vsel %vm46, %v45, 0
    %v120 = vsel %vm46, %v21, 0
    %122 = vmatprep.subr.mxu0 0.0
    %123 = vmatpush1.xpose.msra.mxu0 %v120
    %124 = vmatprep.subr.mxu0 0.0
    %125 = vmatpush1.xpose.msra.mxu0 0.0
    %126 = vmatprep.subr.mxu0 0.0
    %127 = vmatpush1.xpose.msra.mxu0 0.0
    %128 = vmatprep.subr.mxu0 0.0
    %129 = vmatpush1.xpose.msra.mxu0 0.0
    %130 = vmatprep.subr.mxu0 0.0
    %131 = vmatpush1.xpose.msra.mxu0 0.0
    %132 = vmatprep.subr.mxu0 0.0
    %133 = vmatpush1.xpose.msra.mxu0 0.0
    %134 = vmatprep.subr.mxu0 0.0
    %135 = vmatpush1.xpose.msra.mxu0 0.0
    %136 = vmatprep.subr.mxu0 0.0
    %137 = vmatpush1.xpose.msra.mxu0 0.0
    %138 = vmatprep.subr.mxu0 0.0
    %139 = vmatpush1.xpose.msra.mxu0 0.0
    %140 = vmatprep.subr.mxu0 0.0
    %141 = vmatpush1.xpose.msra.mxu0 0.0
    %142 = vmatprep.subr.mxu0 0.0
    %143 = vmatpush1.xpose.msra.mxu0 0.0
    %144 = vmatprep.subr.mxu0 0.0
    %145 = vmatpush1.xpose.msra.mxu0 0.0
    %146 = vmatprep.subr.mxu0 0.0
    %147 = vmatpush1.xpose.msra.mxu0 0.0
    %148 = vmatprep.subr.mxu0 0.0
    %149 = vmatpush1.xpose.msra.mxu0 0.0
    %150 = vmatprep.subr.mxu0 0.0
    %151 = vmatpush1.xpose.msra.mxu0 0.0
    %152 = vmatprep.subr.mxu0 0.0
    %153 = vmatpush1.xpose.msra.mxu0 0.0
    %154 = vmatprep.subr.mxu0 0.0
    %155 = vmatpush1.xpose.msra.mxu0 0.0
    %156 = vmatprep.subr.mxu0 0.0
    %157 = vmatpush1.xpose.msra.mxu0 0.0
    %158 = vmatprep.subr.mxu0 0.0
    %159 = vmatpush1.xpose.msra.mxu0 0.0
    %160 = vmatprep.subr.mxu0 0.0
    %161 = vmatpush1.xpose.msra.mxu0 0.0
    %162 = vmatprep.subr.mxu0 0.0
    %163 = vmatpush1.xpose.msra.mxu0 0.0
    %164 = vmatprep.subr.mxu0 0.0
    %165 = vmatpush1.xpose.msra.mxu0 0.0
    %166 = vmatprep.subr.mxu0 0.0
    %167 = vmatpush1.xpose.msra.mxu0 0.0
    %168 = vmatprep.subr.mxu0 0.0
    %169 = vmatpush1.xpose.msra.mxu0 0.0
    %170 = vmatprep.subr.mxu0 0.0
    %171 = vmatpush1.xpose.msra.mxu0 0.0
    %172 = vmatprep.subr.mxu0 0.0
    %173 = vmatpush1.xpose.msra.mxu0 0.0
    %174 = vmatprep.subr.mxu0 0.0
    %175 = vmatpush1.xpose.msra.mxu0 0.0
    %176 = vmatprep.subr.mxu0 0.0
    %177 = vmatpush1.xpose.msra.mxu0 0.0
    %178 = vmatprep.subr.mxu0 0.0
    %179 = vmatpush1.xpose.msra.mxu0 0.0
    %180 = vmatprep.subr.mxu0 0.0
    %181 = vmatpush1.xpose.msra.mxu0 0.0
    %182 = vmatprep.subr.mxu0 0.0
    %183 = vmatpush1.xpose.msra.mxu0 0.0
    %184 = vmatprep.subr.mxu0 0.0
    %185 = vmatpush1.xpose.msra.mxu0 0.0
    %186 = vmatprep.mubr.f32.mxu0 0.0
    %187 = vmatmul.mubr.f32.gmra.mrb[0].mxu0 %v48
    %v188 = vpop.f32.mrb[0].mxu0
    %v189 = vadd.f32 0.0, %v188
    %v190 = vpop.f32.mrb[0].mxu0
    %191 = vmatprep.mubr.f32.mxu0 0.0
    %192 = vmatmul.mubr.f32.gmra.mrb[0].mxu0 %v51
    %v193 = vpop.f32.mrb[0].mxu0
    %v194 = vadd.f32 0.0, %v193
    %v195 = vpop.f32.mrb[0].mxu0
    %196 = vmatprep.mubr.f32.mxu0 0.0
    %197 = vmatmul.mubr.f32.gmra.mrb[0].mxu0 %v54
    %v198 = vpop.f32.mrb[0].mxu0
    %v199 = vadd.f32 0.0, %v198
    %v200 = vpop.f32.mrb[0].mxu0
    %201 = vmatprep.mubr.f32.mxu0 0.0
    %202 = vmatmul.mubr.f32.gmra.mrb[0].mxu0 %v57
    %v203 = vpop.f32.mrb[0].mxu0
    %v204 = vadd.f32 0.0, %v203
    %v205 = vpop.f32.mrb[0].mxu0
    %206 = vmatprep.mubr.f32.mxu0 0.0
    %207 = vmatmul.mubr.f32.gmra.mrb[0].mxu0 %v60
    %v208 = vpop.f32.mrb[0].mxu0
    %v209 = vadd.f32 0.0, %v208
    %v210 = vpop.f32.mrb[0].mxu0
    %211 = vmatprep.mubr.f32.mxu0 0.0
    %212 = vmatmul.mubr.f32.gmra.mrb[0].mxu0 %v63
    %v213 = vpop.f32.mrb[0].mxu0
    %v214 = vadd.f32 0.0, %v213
    %v215 = vpop.f32.mrb[0].mxu0
    %216 = vmatprep.mubr.f32.mxu0 0.0
    %217 = vmatmul.mubr.f32.gmra.mrb[0].mxu0 %v66
    %v218 = vpop.f32.mrb[0].mxu0
    %v219 = vadd.f32 0.0, %v218
    %v220 = vpop.f32.mrb[0].mxu0
    %221 = vmatprep.mubr.f32.mxu0 0.0
    %222 = vmatmul.mubr.f32.gmra.mrb[0].mxu0 %v69
    %v223 = vpop.f32.mrb[0].mxu0
    %v224 = vadd.f32 0.0, %v223
    %v225 = vpop.f32.mrb[0].mxu0
    %226 = vmatprep.mubr.f32.mxu0 0.0
    %227 = vmatmul.mubr.f32.gmra.mrb[0].mxu0 %v72
    %v228 = vpop.f32.mrb[0].mxu0
    %v229 = vadd.f32 0.0, %v228
    %v230 = vpop.f32.mrb[0].mxu0
    %231 = vmatprep.mubr.f32.mxu0 0.0
    %232 = vmatmul.mubr.f32.gmra.mrb[0].mxu0 %v75
    %v233 = vpop.f32.mrb[0].mxu0
    %v234 = vadd.f32 0.0, %v233
    %v235 = vpop.f32.mrb[0].mxu0
    %236 = vmatprep.mubr.f32.mxu0 0.0
    %237 = vmatmul.mubr.f32.gmra.mrb[0].mxu0 %v78
    %v238 = vpop.f32.mrb[0].mxu0
    %v239 = vadd.f32 0.0, %v238
    %v240 = vpop.f32.mrb[0].mxu0
    %241 = vmatprep.mubr.f32.mxu0 0.0
    %242 = vmatmul.mubr.f32.gmra.mrb[0].mxu0 %v81
    %v243 = vpop.f32.mrb[0].mxu0
    %v244 = vadd.f32 0.0, %v243
    %v245 = vpop.f32.mrb[0].mxu0
    %246 = vmatprep.mubr.f32.mxu0 0.0
    %247 = vmatmul.mubr.f32.gmra.mrb[0].mxu0 %v84
    %v248 = vpop.f32.mrb[0].mxu0
    %v249 = vadd.f32 0.0, %v248
    %v250 = vpop.f32.mrb[0].mxu0
    %251 = vmatprep.mubr.f32.mxu0 0.0
    %252 = vmatmul.mubr.f32.gmra.mrb[0].mxu0 %v87
    %v253 = vpop.f32.mrb[0].mxu0
    %v254 = vadd.f32 0.0, %v253
    %v255 = vpop.f32.mrb[0].mxu0
    %256 = vmatprep.mubr.f32.mxu0 0.0
    %257 = vmatmul.mubr.f32.gmra.mrb[0].mxu0 %v90
    %v258 = vpop.f32.mrb[0].mxu0
    %v259 = vadd.f32 0.0, %v258
    %v260 = vpop.f32.mrb[0].mxu0
    %261 = vmatprep.mubr.f32.mxu0 0.0
    %262 = vmatmul.mubr.f32.gmra.mrb[0].mxu0 %v93
    %v263 = vpop.f32.mrb[0].mxu0
    %v264 = vadd.f32 0.0, %v263
    %v265 = vpop.f32.mrb[0].mxu0
    %266 = vmatprep.mubr.f32.mxu0 0.0
    %267 = vmatmul.mubr.f32.gmra.mrb[0].mxu0 %v96
    %v268 = vpop.f32.mrb[0].mxu0
    %v269 = vadd.f32 0.0, %v268
    %v270 = vpop.f32.mrb[0].mxu0
    %271 = vmatprep.mubr.f32.mxu0 0.0
    %272 = vmatmul.mubr.f32.gmra.mrb[0].mxu0 %v99
    %v273 = vpop.f32.mrb[0].mxu0
    %v274 = vadd.f32 0.0, %v273
    %v275 = vpop.f32.mrb[0].mxu0
    %276 = vmatprep.mubr.f32.mxu0 0.0
    %277 = vmatmul.mubr.f32.gmra.mrb[0].mxu0 %v102
    %v278 = vpop.f32.mrb[0].mxu0
    %v279 = vadd.f32 0.0, %v278
    %v280 = vpop.f32.mrb[0].mxu0
    %281 = vmatprep.mubr.f32.mxu0 0.0
    %282 = vmatmul.mubr.f32.gmra.mrb[0].mxu0 %v105
    %v283 = vpop.f32.mrb[0].mxu0
    %v284 = vadd.f32 0.0, %v283
    %v285 = vpop.f32.mrb[0].mxu0
    %286 = vmatprep.mubr.f32.mxu0 0.0
    %287 = vmatmul.mubr.f32.gmra.mrb[0].mxu0 %v108
    %v288 = vpop.f32.mrb[0].mxu0
    %v289 = vadd.f32 0.0, %v288
    %v290 = vpop.f32.mrb[0].mxu0
    %291 = vmatprep.mubr.f32.mxu0 0.0
    %292 = vmatmul.mubr.f32.gmra.mrb[0].mxu0 %v111
    %v293 = vpop.f32.mrb[0].mxu0
    %v294 = vadd.f32 0.0, %v293
    %v295 = vpop.f32.mrb[0].mxu0
    %296 = vmatprep.mubr.f32.mxu0 0.0
    %297 = vmatmul.mubr.f32.gmra.mrb[0].mxu0 %v114
    %v298 = vpop.f32.mrb[0].mxu0
    %v299 = vadd.f32 0.0, %v298
    %v300 = vpop.f32.mrb[0].mxu0
    %301 = vmatprep.mubr.f32.mxu0 0.0
    %302 = vmatmul.mubr.f32.gmra.mrb[0].mxu0 %v117
    %v303 = vpop.f32.mrb[0].mxu0
    %v304 = vadd.f32 0.0, %v303
    %v305 = vpop.f32.mrb[0].mxu0
    %306 = vdwg.mxu0
    %v307 = vld [vmem:[%s3] sm:$0xff]
    %v308 = vld [vmem:[%s3 + $0x8] sm:$0xff]
    %v309 = vld [vmem:[%s3 + $0x10] sm:$0xff]
    %v310 = vld [vmem:[%s3 + $0x18] sm:$0xff]
    %v311 = vld [vmem:[%s3 + $0x20] sm:$0xff]
    %v312 = vld [vmem:[%s3 + $0x28] sm:$0xff]
    %v313 = vld [vmem:[%s3 + $0x30] sm:$0xff]
    %v314 = vld [vmem:[%s3 + $0x38] sm:$0xff]
    %v315 = vld [vmem:[%s3 + $0x40] sm:$0xff]
    %v316 = vld [vmem:[%s3 + $0x48] sm:$0xff]
    %v317 = vld [vmem:[%s3 + $0x50] sm:$0xff]
    %v318 = vld [vmem:[%s3 + $0x58] sm:$0xff]
    %v319 = vld [vmem:[%s3 + $0x60] sm:$0xff]
    %v320 = vld [vmem:[%s3 + $0x68] sm:$0xff]
    %v321 = vld [vmem:[%s3 + $0x70] sm:$0xff]
    %v322 = vld [vmem:[%s3 + $0x78] sm:$0xff]
    %v323 = vld [vmem:[%s3 + $0x80] sm:$0xff]
    %v324 = vld [vmem:[%s3 + $0x88] sm:$0xff]
    %v325 = vld [vmem:[%s3 + $0x90] sm:$0xff]
    %v326 = vld [vmem:[%s3 + $0x98] sm:$0xff]
    %v327 = vld [vmem:[%s3 + $0xa0] sm:$0xff]
    %v328 = vld [vmem:[%s3 + $0xa8] sm:$0xff]
    %v329 = vld [vmem:[%s3 + $0xb0] sm:$0xff]
    %v330 = vld [vmem:[%s3 + $0xb8] sm:$0xff]
    %332 = vset.pattern.permute.xlu0 0
    %333 = vperm.xlu0 %332, %v307
    %v334 = vpop.permute.xlu0 %333
    %337 = vset.pattern.permute.xlu0 0
    %338 = vperm.xlu0 %337, %v308
    %v339 = vpop.permute.xlu0 %338
    %342 = vset.pattern.permute.xlu0 0
    %343 = vperm.xlu0 %342, %v309
    %v344 = vpop.permute.xlu0 %343
    %347 = vset.pattern.permute.xlu0 0
    %348 = vperm.xlu0 %347, %v310
    %v349 = vpop.permute.xlu0 %348
    %352 = vset.pattern.permute.xlu0 0
    %353 = vperm.xlu0 %352, %v311
    %v354 = vpop.permute.xlu0 %353
    %357 = vset.pattern.permute.xlu0 0
    %358 = vperm.xlu0 %357, %v312
    %v359 = vpop.permute.xlu0 %358
    %362 = vset.pattern.permute.xlu0 0
    %363 = vperm.xlu0 %362, %v313
    %v364 = vpop.permute.xlu0 %363
    %367 = vset.pattern.permute.xlu0 0
    %368 = vperm.xlu0 %367, %v314
    %v369 = vpop.permute.xlu0 %368
    %372 = vset.pattern.permute.xlu0 0
    %373 = vperm.xlu0 %372, %v315
    %v374 = vpop.permute.xlu0 %373
    %377 = vset.pattern.permute.xlu0 0
    %378 = vperm.xlu0 %377, %v316
    %v379 = vpop.permute.xlu0 %378
    %382 = vset.pattern.permute.xlu0 0
    %383 = vperm.xlu0 %382, %v317
    %v384 = vpop.permute.xlu0 %383
    %387 = vset.pattern.permute.xlu0 0
    %388 = vperm.xlu0 %387, %v318
    %v389 = vpop.permute.xlu0 %388
    %392 = vset.pattern.permute.xlu0 0
    %393 = vperm.xlu0 %392, %v319
    %v394 = vpop.permute.xlu0 %393
    %397 = vset.pattern.permute.xlu0 0
    %398 = vperm.xlu0 %397, %v320
    %v399 = vpop.permute.xlu0 %398
    %402 = vset.pattern.permute.xlu0 0
    %403 = vperm.xlu0 %402, %v321
    %v404 = vpop.permute.xlu0 %403
    %407 = vset.pattern.permute.xlu0 0
    %408 = vperm.xlu0 %407, %v322
    %v409 = vpop.permute.xlu0 %408
    %412 = vset.pattern.permute.xlu0 0
    %413 = vperm.xlu0 %412, %v323
    %v414 = vpop.permute.xlu0 %413
    %417 = vset.pattern.permute.xlu0 0
    %418 = vperm.xlu0 %417, %v324
    %v419 = vpop.permute.xlu0 %418
    %422 = vset.pattern.permute.xlu0 0
    %423 = vperm.xlu0 %422, %v325
    %v424 = vpop.permute.xlu0 %423
    %427 = vset.pattern.permute.xlu0 0
    %428 = vperm.xlu0 %427, %v326
    %v429 = vpop.permute.xlu0 %428
    %432 = vset.pattern.permute.xlu0 0
    %433 = vperm.xlu0 %432, %v327
    %v434 = vpop.permute.xlu0 %433
    %437 = vset.pattern.permute.xlu0 0
    %438 = vperm.xlu0 %437, %v328
    %v439 = vpop.permute.xlu0 %438
    %442 = vset.pattern.permute.xlu0 0
    %443 = vperm.xlu0 %442, %v329
    %v444 = vpop.permute.xlu0 %443
    %447 = vset.pattern.permute.xlu0 0
    %448 = vperm.xlu0 %447, %v330
    %v449 = vpop.permute.xlu0 %448
    %v451 = vsub.f32 %v189, %v334
    %v452 = vsub.f32 %v194, %v339
    %v453 = vsub.f32 %v199, %v344
    %v454 = vsub.f32 %v204, %v349
    %v455 = vsub.f32 %v209, %v354
    %v456 = vsub.f32 %v214, %v359
    %v457 = vsub.f32 %v219, %v364
    %v458 = vsub.f32 %v224, %v369
    %v459 = vsub.f32 %v229, %v374
    %v460 = vsub.f32 %v234, %v379
    %v461 = vsub.f32 %v239, %v384
    %v462 = vsub.f32 %v244, %v389
    %v463 = vsub.f32 %v249, %v394
    %v464 = vsub.f32 %v254, %v399
    %v465 = vsub.f32 %v259, %v404
    %v466 = vsub.f32 %v264, %v409
    %v467 = vsub.f32 %v269, %v414
    %v468 = vsub.f32 %v274, %v419
    %v469 = vsub.f32 %v279, %v424
    %v470 = vsub.f32 %v284, %v429
    %v471 = vsub.f32 %v289, %v434
    %v472 = vsub.f32 %v294, %v439
    %v473 = vsub.f32 %v299, %v444
    %v474 = vsub.f32 %v304, %v449
    %v475 = vmul.f32 %v451, %v451
    %v476 = vmul.f32 %v452, %v452
    %v477 = vmul.f32 %v453, %v453
    %v478 = vmul.f32 %v454, %v454
    %v479 = vmul.f32 %v455, %v455
    %v480 = vmul.f32 %v456, %v456
    %v481 = vmul.f32 %v457, %v457
    %v482 = vmul.f32 %v458, %v458
    %v483 = vmul.f32 %v459, %v459
    %v484 = vmul.f32 %v460, %v460
    %v485 = vmul.f32 %v461, %v461
    %v486 = vmul.f32 %v462, %v462
    %v487 = vmul.f32 %v463, %v463
    %v488 = vmul.f32 %v464, %v464
    %v489 = vmul.f32 %v465, %v465
    %v490 = vmul.f32 %v466, %v466
    %v491 = vmul.f32 %v467, %v467
    %v492 = vmul.f32 %v468, %v468
    %v493 = vmul.f32 %v469, %v469
    %v494 = vmul.f32 %v470, %v470
    %v495 = vmul.f32 %v471, %v471
    %v496 = vmul.f32 %v472, %v472
    %v497 = vmul.f32 %v473, %v473
    %v498 = vmul.f32 %v474, %v474
    %v499 = vld [vmem:[%s2] sm:$0xff]
    %v500 = vld [vmem:[%s2 + $0x8] sm:$0xff]
    %vm501 = vcmask 523264
    %v503 = vsel %vm501, %v500, 0
    %505 = vmatprep.subr.mxu0 0.0
    %506 = vmatpush1.msra.mxu0 %v475
    %507 = vmatprep.subr.mxu0 0.0
    %508 = vmatpush1.msra.mxu0 %v476
    %509 = vmatprep.subr.mxu0 0.0
    %510 = vmatpush1.msra.mxu0 %v477
    %511 = vmatprep.subr.mxu0 0.0
    %512 = vmatpush1.msra.mxu0 %v478
    %513 = vmatprep.subr.mxu0 0.0
    %514 = vmatpush1.msra.mxu0 %v479
    %515 = vmatprep.subr.mxu0 0.0
    %516 = vmatpush1.msra.mxu0 %v480
    %517 = vmatprep.subr.mxu0 0.0
    %518 = vmatpush1.msra.mxu0 %v481
    %519 = vmatprep.subr.mxu0 0.0
    %520 = vmatpush1.msra.mxu0 %v482
    %521 = vmatprep.subr.mxu0 0.0
    %522 = vmatpush1.msra.mxu0 %v483
    %523 = vmatprep.subr.mxu0 0.0
    %524 = vmatpush1.msra.mxu0 %v484
    %525 = vmatprep.subr.mxu0 0.0
    %526 = vmatpush1.msra.mxu0 %v485
    %527 = vmatprep.subr.mxu0 0.0
    %528 = vmatpush1.msra.mxu0 %v486
    %529 = vmatprep.subr.mxu0 0.0
    %530 = vmatpush1.msra.mxu0 %v487
    %531 = vmatprep.subr.mxu0 0.0
    %532 = vmatpush1.msra.mxu0 %v488
    %533 = vmatprep.subr.mxu0 0.0
    %534 = vmatpush1.msra.mxu0 %v489
    %535 = vmatprep.subr.mxu0 0.0
    %536 = vmatpush1.msra.mxu0 %v490
    %537 = vmatprep.subr.mxu0 0.0
    %538 = vmatpush1.msra.mxu0 %v491
    %539 = vmatprep.subr.mxu0 0.0
    %540 = vmatpush1.msra.mxu0 %v492
    %541 = vmatprep.subr.mxu0 0.0
    %542 = vmatpush1.msra.mxu0 %v493
    %543 = vmatprep.subr.mxu0 0.0
    %544 = vmatpush1.msra.mxu0 %v494
    %545 = vmatprep.subr.mxu0 0.0
    %546 = vmatpush1.msra.mxu0 %v495
    %547 = vmatprep.subr.mxu0 0.0
    %548 = vmatpush1.msra.mxu0 %v496
    %549 = vmatprep.subr.mxu0 0.0
    %550 = vmatpush1.msra.mxu0 %v497
    %551 = vmatprep.subr.mxu0 0.0
    %552 = vmatpush1.msra.mxu0 %v498
    %553 = vmatprep.subr.mxu0 0.0
    %554 = vmatpush1.msra.mxu0 0.0
    %555 = vmatprep.subr.mxu0 0.0
    %556 = vmatpush1.msra.mxu0 0.0
    %557 = vmatprep.subr.mxu0 0.0
    %558 = vmatpush1.msra.mxu0 0.0
    %559 = vmatprep.subr.mxu0 0.0
    %560 = vmatpush1.msra.mxu0 0.0
    %561 = vmatprep.subr.mxu0 0.0
    %562 = vmatpush1.msra.mxu0 0.0
    %563 = vmatprep.subr.mxu0 0.0
    %564 = vmatpush1.msra.mxu0 0.0
    %565 = vmatprep.subr.mxu0 0.0
    %566 = vmatpush1.msra.mxu0 0.0
    %567 = vmatprep.subr.mxu0 0.0
    %568 = vmatpush1.msra.mxu0 0.0
    %569 = vmatprep.mubr.f32.mxu0 %v503
    %570 = vmatmul.mubr.f32.gmra.mrb[0].mxu0 %v499
    %v571 = vpop.f32.mrb[0].mxu0
    %v572 = vadd.f32 0.0, %v571
    %v573 = vpop.f32.mrb[0].mxu0
    %574 = vdwg.mxu0
    %v575 = vld [vmem:[%s4] sm:$0xff]
    %v576 = vmul.f32 %v572, 0.5
    %578 = vset.pattern.permute.xlu0 0
    %579 = vperm.xlu0 %578, %v575
    %v580 = vpop.permute.xlu0 %579
    %v582 = vsub.f32 %v580, %v576
    %vm583 = vcmask 64512
    %v584 = vsel %vm583, %v582, -inf
    %v585 = vrot.slane %v584, 4
    %v586 = vmax.f32 %v584, %v585
    %v587 = vrot.slane %v586, 2
    %v588 = vmax.f32 %v586, %v587
    %v589 = vrot.slane %v588, 1
    %v590 = vmax.f32 %v588, %v589
    %v591 = vsub.f32 %v582, %v590
    %v592 = vmul.f32 %v591, 1.442695
    %v593 = vpow.pop %v592
    %v594 = vsel %vm583, %v593, 0.0
    %v595 = vrot.slane %v594, 4
    %v596 = vadd.f32 %v594, %v595
    %v597 = vrot.slane %v596, 2
    %v598 = vadd.f32 %v596, %v597
    %v599 = vrot.slane %v598, 1
    %v600 = vadd.f32 %v598, %v599
    %v601 = vlog2.pop %v600
    %v602 = vmul.f32 %v601, 0.6931472
    %v603 = vadd.f32 %v590, %v602
    %v604 = vsub.f32 0.0, %v603
    %vm605 = vcmask 57344
    %606 = vst.msk [vmem:[#allocation2] sm:$0x1] %vm605, %v604
    // Predicated region
    $region22: #{tpu_custom_call.1} parent=1 // pred_check
      _
    $region23: #{tpu_custom_call.1} parent=1 // pred_check_branch
      %608 = sbr.rel (0) target = $region25
    $region24: #{tpu_custom_call.1} parent=1 // pred_region
      %s610 = ssub.s32 16, 16
      %611 = vsyncadd [#allocation3], %s610
      %s613 = sshll.u32 [#allocation2], 4
      %s614 = int_to_ptr.vmem [resolvable:$true] %s613
      %616 = dma.vmem_to_hbm [thread:$0]  %s614, 16, %s5, [#allocation3]
    $region25: #{tpu_custom_call.1} parent=1 // pred_fallthru
      _
    // Predicated region
    $region26: #{tpu_custom_call.1} parent=1 // pred_check
      _
    $region27: #{tpu_custom_call.1} parent=1 // pred_check_branch
      %618 = sbr.rel (0) target = $region29
    $region28: #{tpu_custom_call.1} parent=1 // pred_region
      %619 = dma.done [#allocation3], 16
    $region29: #{tpu_custom_call.1} parent=1 // pred_fallthru
      _
    %620 = vsyncpa [#allocation3], 1

</llo_original>
